<compile_context>
chip_gen: v5e
topology: v5e:2x2
jax: 0.10.0
libtpu: 0.0.40
codegen_flags: <defaults>
</compile_context>

<pallas_src>
import jax
import jax.numpy as jnp
from jax.experimental import pallas as pl
from jax.experimental.pallas import tpu as pltpu


def _round_up(x, m):
    return ((x + m - 1) // m) * m


def init_pinn_params(key, input_dim, hidden_dims, output_dim):
    """Init matching nn.Linear default (uniform +/- 1/sqrt(fan_in)).

    Weights are stored as (in_dim, out_dim) so the reference computes
    x @ W + b (== x @ W_torch.T + b).
    """
    dims = [input_dim] + list(hidden_dims) + [output_dim]
    params = []
    for i in range(len(dims) - 1):
        fan_in, fan_out = dims[i], dims[i + 1]
        key, kw, kb = jax.random.split(key, 3)
        bound = 1.0 / float(fan_in) ** 0.5
        w = jax.random.uniform(kw, (fan_in, fan_out), jnp.float32, -bound, bound)
        b = jax.random.uniform(kb, (fan_out,), jnp.float32, -bound, bound)
        params.append((w, b))
    return params


def prepare_pinn_params(params, input_dim, mxu_dtype=jnp.float32):
    """Pads, transposes and stacks parameters ONCE (out of the per-call path).

    Layout is transposed (batch on lanes): each layer is stored as
    W^T of shape (out, in), bias as a (out, 1) column.
    `mxu_dtype=jnp.bfloat16` halves weight VMEM/DMA and uses single-pass bf16
    MXU matmuls on v6e/v7x (validate PINN accuracy before adopting).
    """
    assert len(params) >= 2, "expect at least one hidden layer"
    hidden_out_dims = [w.shape[1] for (w, _) in params[:-1]]
    output_dim = params[-1][0].shape[1]

    d_pad = _round_up(max(hidden_out_dims), 128)   # padded hidden width
    out_pad = max(8, _round_up(output_dim, 8))     # output rows (sublane-aligned)
    broadcast_first = (input_dim == 1)
    in_pad = 1 if broadcast_first else _round_up(input_dim, 128)

    # ---- layer 0 (input -> hidden[0]) ----
    w0, b0 = params[0]
    h0 = w0.shape[1]
    if broadcast_first:
        # stored as (d_pad, 1): outer-product layer done on the VPU in-kernel.
        w0_p = jnp.zeros((d_pad, 1), jnp.float32).at[:h0, 0].set(w0[0, :])
    else:
        w0_p = jnp.zeros((d_pad, in_pad), jnp.float32).at[:h0, :input_dim].set(w0.T)
    b0_p = jnp.zeros((d_pad, 1), jnp.float32).at[:h0, 0].set(b0)

    # ---- hidden -> hidden layers, stacked ----
    n_mid = len(params) - 2
    ws = jnp.zeros((n_mid, d_pad, d_pad), mxu_dtype)
    bs = jnp.zeros((n_mid, d_pad, 1), jnp.float32)
    for j, (w, b) in enumerate(params[1:-1]):
        din, dout = w.shape
        ws = ws.at[j, :dout, :din].set(w.T.astype(mxu_dtype))
        bs = bs.at[j, :dout, 0].set(b)

    # ---- output layer (hidden[-1] -> output_dim), kept 8 rows wide ----
    w_last, b_last = params[-1]
    din, dout = w_last.shape
    wo = jnp.zeros((out_pad, d_pad), mxu_dtype).at[:dout, :din].set(
        w_last.T.astype(mxu_dtype))
    bo = jnp.zeros((out_pad, 1), jnp.float32).at[:dout, 0].set(b_last)

    meta = dict(
        input_dim=input_dim,
        output_dim=output_dim,
        d_pad=d_pad,
        in_pad=in_pad,
        out_pad=out_pad,
        n_mid=n_mid,
        broadcast_first=broadcast_first,
        mxu_dtype=mxu_dtype,
    )
    return (w0_p, b0_p, ws, bs, wo, bo), meta


def _const_index_map(ndim):
    zeros = (0,) * ndim
    return lambda *_: zeros


def _make_kernel(n_mid, broadcast_first, mxu_dtype):
    cast_mxu = jnp.dtype(mxu_dtype) != jnp.dtype(jnp.float32)

    def body(t_ref, w0_ref, b0_ref, ws_ref, bs_ref, wo_ref, bo_ref, out_ref):
        t = t_ref[...]                                   # (in_pad, TILE_B)
        if broadcast_first:
            # (d_pad, 1) * (1, TILE_B) + (d_pad, 1): pure VPU broadcast
            # multiply-add; no MXU pass over 127 zero columns.
            h = w0_ref[...] * t + b0_ref[...]
        else:
            h = jnp.dot(w0_ref[...], t,
                        preferred_element_type=jnp.float32) + b0_ref[...]
        h = jnp.tanh(h)                                  # layer 0 is hidden

        for l in range(n_mid):                           # hidden -> hidden
            rhs = h.astype(mxu_dtype) if cast_mxu else h
            z = jnp.dot(ws_ref[l], rhs,
                        preferred_element_type=jnp.float32) + bs_ref[l]
            h = jnp.tanh(z)

        rhs = h.astype(mxu_dtype) if cast_mxu else h     # output layer, no tanh
        out = jnp.dot(wo_ref[...], rhs,
                      preferred_element_type=jnp.float32) + bo_ref[...]
        out_ref[...] = out.astype(out_ref.dtype)         # (out_pad, TILE_B)

    if n_mid > 0:
        return body

    def body_no_mid(t_ref, w0_ref, b0_ref, wo_ref, bo_ref, out_ref):
        return body(t_ref, w0_ref, b0_ref, None, None, wo_ref, bo_ref, out_ref)

    return body_no_mid


def make_pinn_forward(padded_params, meta, tile_b_max=2048):
    """Returns a jitted forward(t) using cached, pre-padded parameters.

    Note: tile_b (and hence the pallas_call shapes) depends on the batch size,
    so each distinct batch size triggers one fresh trace/compile.
    """
    w0_p, b0_p, ws, bs, wo, bo = padded_params
    d_pad = meta["d_pad"]
    in_pad = meta["in_pad"]
    out_pad = meta["out_pad"]
    n_mid = meta["n_mid"]
    input_dim = meta["input_dim"]
    output_dim = meta["output_dim"]
    kernel = _make_kernel(n_mid, meta["broadcast_first"], meta["mxu_dtype"])

    weight_ops = [w0_p, b0_p] + ([ws, bs] if n_mid > 0 else []) + [wo, bo]
    weight_specs = [pl.BlockSpec(op.shape, _const_index_map(op.ndim))
                    for op in weight_ops]
    weight_bytes = sum(int(op.size) * op.dtype.itemsize for op in weight_ops)

    def forward(t):
        batch = t.shape[0]
        # Pick the tile so that any batch > 128 produces >= 2 grid steps
        # (lets "parallel" shard across v7x's two TensorCores), capped at
        # tile_b_max so VMEM stays small on all generations.
        half = -(-batch // 2)  # ceil(batch / 2)
        tile_b = max(128, min(tile_b_max, _round_up(half, 128)))
        pad_b = _round_up(batch, tile_b)
        grid = (pad_b // tile_b,)

        # Transpose to batch-on-lanes; jnp.pad (no zeros + scatter per call).
        t_t = jnp.transpose(t.astype(jnp.float32))               # (in, batch)
        t_p = jnp.pad(t_t, ((0, in_pad - input_dim), (0, pad_b - batch)))

        flops = 2 * pad_b * d_pad * (in_pad + n_mid * d_pad + out_pad)
        transcendentals = pad_b * d_pad * (1 + n_mid)
        bytes_accessed = 4 * pad_b * (in_pad + out_pad) + weight_bytes

        out_p = pl.pallas_call(
            kernel,
            out_shape=jax.ShapeDtypeStruct((out_pad, pad_b), jnp.float32),
            grid=grid,
            in_specs=[pl.BlockSpec((in_pad, tile_b), lambda i: (0, i))]  # t
                     + weight_specs,                                     # resident
            out_specs=pl.BlockSpec((out_pad, tile_b), lambda i: (0, i)),
            compiler_params=pltpu.CompilerParams(
                dimension_semantics=("parallel",),   # 2x TC sharding on v7x
            ),
            cost_estimate=pl.CostEstimate(
                flops=flops,
                transcendentals=transcendentals,
                bytes_accessed=bytes_accessed,
            ),
        )(t_p, *weight_ops)

        # (out_pad, pad_b) lane-dense slab -> (batch, output_dim)
        return out_p[:output_dim, :batch].T

    return jax.jit(forward)


def pinn_forward_ref(t, params):
    """Pure-JAX reference for correctness checking."""
    h = t
    for i, (w, b) in enumerate(params):
        h = h @ w + b
        if i < len(params) - 1:
            h = jnp.tanh(h)
    return h


if __name__ == "__main__":
    # SIR-model PINN: input t (time), 3 outputs (S, I, R), tanh activations.
    input_dim = 1
    hidden_dims = [32, 32]
    output_dim = 3
    batch = 1000  # -> tile_b=512, grid=(2,): exercises multi-step grid / 2 TCs

    key = jax.random.PRNGKey(0)
    key, kt = jax.random.split(key)
    t = jax.random.uniform(kt, (batch, input_dim), jnp.float32)

    params = init_pinn_params(key, input_dim, hidden_dims, output_dim)

    # Padding/stacking done once, reused across all forward calls.
    # (Pass mxu_dtype=jnp.bfloat16 here for the v6e/v7x MXU win after
    #  validating PINN accuracy; default f32 keeps this check exact.)
    padded_params, meta = prepare_pinn_params(params, input_dim)
    forward = make_pinn_forward(padded_params, meta, tile_b_max=2048)

    out = jax.block_until_ready(forward(t))

    ref = pinn_forward_ref(t, params)
    assert out.shape == (batch, output_dim)
    assert jnp.allclose(out, ref, atol=1e-5, rtol=1e-5), (out, ref)

    print("KERNEL_OK")
</pallas_src>

<mosaic_0001>
module attributes {stable_mosaic.version = 11 : i64} {
  func.func @body(%arg0: i32, %arg1: memref<1x512xf32, #tpu.memory_space<vmem>>, %arg2: memref<128x1xf32, #tpu.memory_space<vmem>>, %arg3: memref<128x1xf32, #tpu.memory_space<vmem>>, %arg4: memref<1x128x128xf32, #tpu.memory_space<vmem>>, %arg5: memref<1x128x1xf32, #tpu.memory_space<vmem>>, %arg6: memref<8x128xf32, #tpu.memory_space<vmem>>, %arg7: memref<8x1xf32, #tpu.memory_space<vmem>>, %arg8: memref<8x512xf32, #tpu.memory_space<vmem>>) attributes {dimension_semantics = [#tpu.dimension_semantics<parallel>], iteration_bounds = array<i64: 2>, scalar_prefetch = 0 : i64, scratch_operands = 0 : i64, tpu.core_type = #tpu.core_type<tc>, window_params = [{transform_indices = @transform_0, window_bounds = array<i64: 1, 512>}, {pipeline_mode = #tpu.pipeline_mode<synchronous>, transform_indices = @transform_1, window_bounds = array<i64: 128, 1>}, {pipeline_mode = #tpu.pipeline_mode<synchronous>, transform_indices = @transform_2, window_bounds = array<i64: 128, 1>}, {pipeline_mode = #tpu.pipeline_mode<synchronous>, transform_indices = @transform_3, window_bounds = array<i64: 1, 128, 128>}, {pipeline_mode = #tpu.pipeline_mode<synchronous>, transform_indices = @transform_4, window_bounds = array<i64: 1, 128, 1>}, {pipeline_mode = #tpu.pipeline_mode<synchronous>, transform_indices = @transform_5, window_bounds = array<i64: 8, 128>}, {pipeline_mode = #tpu.pipeline_mode<synchronous>, transform_indices = @transform_6, window_bounds = array<i64: 8, 1>}, {transform_indices = @transform_7, window_bounds = array<i64: 8, 512>}]} {
    %c0 = arith.constant 0 : index
    %c0_0 = arith.constant 0 : index
    %0 = vector.load %arg1[%c0, %c0_0] : memref<1x512xf32, #tpu.memory_space<vmem>>, vector<1x512xf32>
    %c0_1 = arith.constant 0 : index
    %c0_2 = arith.constant 0 : index
    %1 = vector.load %arg2[%c0_1, %c0_2] : memref<128x1xf32, #tpu.memory_space<vmem>>, vector<128x1xf32>
    %2 = vector.broadcast %1 : vector<128x1xf32> to vector<128x512xf32>
    %3 = vector.broadcast %0 : vector<1x512xf32> to vector<128x512xf32>
    %4 = arith.mulf %2, %3 : vector<128x512xf32>
    %c0_3 = arith.constant 0 : index
    %c0_4 = arith.constant 0 : index
    %5 = vector.load %arg3[%c0_3, %c0_4] : memref<128x1xf32, #tpu.memory_space<vmem>>, vector<128x1xf32>
    %6 = vector.broadcast %5 : vector<128x1xf32> to vector<128x512xf32>
    %7 = arith.addf %4, %6 : vector<128x512xf32>
    %8 = math.tanh %7 : vector<128x512xf32>
    %c0_5 = arith.constant 0 : index
    %c0_6 = arith.constant 0 : index
    %c0_7 = arith.constant 0 : index
    %9 = vector.load %arg4[%c0_5, %c0_6, %c0_7] : memref<1x128x128xf32, #tpu.memory_space<vmem>>, vector<1x128x128xf32>
    %10 = vector.shape_cast %9 : vector<1x128x128xf32> to vector<128x128xf32>
    %cst = arith.constant dense<0.000000e+00> : vector<128x512xf32>
    %11 = tpu.matmul %10, %8, %cst {dimension_numbers = #tpu.dot_dimension_numbers<[1], [0], [0], [1], [0, 0, 1, 1], [], []>} : vector<128x128xf32>, vector<128x512xf32>, vector<128x512xf32> -> vector<128x512xf32>
    %c0_8 = arith.constant 0 : index
    %c0_9 = arith.constant 0 : index
    %c0_10 = arith.constant 0 : index
    %12 = vector.load %arg5[%c0_8, %c0_9, %c0_10] : memref<1x128x1xf32, #tpu.memory_space<vmem>>, vector<1x128x1xf32>
    %13 = vector.shape_cast %12 : vector<1x128x1xf32> to vector<128x1xf32>
    %14 = vector.broadcast %13 : vector<128x1xf32> to vector<128x512xf32>
    %15 = arith.addf %11, %14 : vector<128x512xf32>
    %16 = math.tanh %15 : vector<128x512xf32>
    %c0_11 = arith.constant 0 : index
    %c0_12 = arith.constant 0 : index
    %17 = vector.load %arg6[%c0_11, %c0_12] : memref<8x128xf32, #tpu.memory_space<vmem>>, vector<8x128xf32>
    %cst_13 = arith.constant dense<0.000000e+00> : vector<8x512xf32>
    %18 = tpu.matmul %17, %16, %cst_13 {dimension_numbers = #tpu.dot_dimension_numbers<[1], [0], [0], [1], [0, 0, 1, 1], [], []>} : vector<8x128xf32>, vector<128x512xf32>, vector<8x512xf32> -> vector<8x512xf32>
    %c0_14 = arith.constant 0 : index
    %c0_15 = arith.constant 0 : index
    %19 = vector.load %arg7[%c0_14, %c0_15] : memref<8x1xf32, #tpu.memory_space<vmem>>, vector<8x1xf32>
    %20 = vector.broadcast %19 : vector<8x1xf32> to vector<8x512xf32>
    %21 = arith.addf %18, %20 : vector<8x512xf32>
    %c0_16 = arith.constant 0 : index
    %c0_17 = arith.constant 0 : index
    %22 = vector.load %arg8[%c0_16, %c0_17] : memref<8x512xf32, #tpu.memory_space<vmem>>, vector<8x512xf32>
    tpu.vector_store %arg8[%c0_16, %c0_17], %21 {strides = array<i32>} : memref<8x512xf32, #tpu.memory_space<vmem>>, vector<8x512xf32>,
    return
  }
  func.func @transform_0(%arg0: i32) -> (i32, i32) {
    %c0_i32 = arith.constant 0 : i32
    %c0_i32_0 = arith.constant 0 : i32
    return %c0_i32, %arg0 : i32, i32
  }
  func.func @transform_1(%arg0: i32) -> (i32, i32) {
    %c0_i32 = arith.constant 0 : i32
    %c0_i32_0 = arith.constant 0 : i32
    %c0_i32_1 = arith.constant 0 : i32
    return %c0_i32, %c0_i32_0 : i32, i32
  }
  func.func @transform_2(%arg0: i32) -> (i32, i32) {
    %c0_i32 = arith.constant 0 : i32
    %c0_i32_0 = arith.constant 0 : i32
    %c0_i32_1 = arith.constant 0 : i32
    return %c0_i32, %c0_i32_0 : i32, i32
  }
  func.func @transform_3(%arg0: i32) -> (i32, i32, i32) {
    %c0_i32 = arith.constant 0 : i32
    %c0_i32_0 = arith.constant 0 : i32
    %c0_i32_1 = arith.constant 0 : i32
    %c0_i32_2 = arith.constant 0 : i32
    return %c0_i32, %c0_i32_0, %c0_i32_1 : i32, i32, i32
  }
  func.func @transform_4(%arg0: i32) -> (i32, i32, i32) {
    %c0_i32 = arith.constant 0 : i32
    %c0_i32_0 = arith.constant 0 : i32
    %c0_i32_1 = arith.constant 0 : i32
    %c0_i32_2 = arith.constant 0 : i32
    return %c0_i32, %c0_i32_0, %c0_i32_1 : i32, i32, i32
  }
  func.func @transform_5(%arg0: i32) -> (i32, i32) {
    %c0_i32 = arith.constant 0 : i32
    %c0_i32_0 = arith.constant 0 : i32
    %c0_i32_1 = arith.constant 0 : i32
    return %c0_i32, %c0_i32_0 : i32, i32
  }
  func.func @transform_6(%arg0: i32) -> (i32, i32) {
    %c0_i32 = arith.constant 0 : i32
    %c0_i32_0 = arith.constant 0 : i32
    %c0_i32_1 = arith.constant 0 : i32
    return %c0_i32, %c0_i32_0 : i32, i32
  }
  func.func @transform_7(%arg0: i32) -> (i32, i32) {
    %c0_i32 = arith.constant 0 : i32
    %c0_i32_0 = arith.constant 0 : i32
    return %c0_i32, %arg0 : i32, i32
  }
}

</mosaic_0001>

<llo_original>
// kernel: forward.1
$region0: #{forward.1}
  #allocation0 [shape = 'u32[]', space=smem, size = 0x4, offset = 0x4, fixed_abs, tag = 'smem constant byte address 0x4 - core index']
  #allocation1 [shape = 'u32[72,128]{1,0:T(1,128)}', space=vmem, size = 0x9000, scoped, tag = 'internal scratch']
  %s0 = inlined_call_operand.vmem [shape: f32[1,1024], index: 0, kind: input, shape index: {}]
  %s1 = inlined_call_operand.hbm [shape: f32[128,1], index: 1, kind: input, shape index: {}]
  %s2 = inlined_call_operand.hbm [shape: f32[128,1], index: 2, kind: input, shape index: {}]
  %s3 = inlined_call_operand.hbm [shape: f32[1,128,128], index: 3, kind: input, shape index: {}]
  %s4 = inlined_call_operand.hbm [shape: f32[1,128,1], index: 4, kind: input, shape index: {}]
  %s5 = inlined_call_operand.vmem [shape: f32[8,128], index: 5, kind: input, shape index: {}]
  %s6 = inlined_call_operand.vmem [shape: f32[8,1], index: 6, kind: input, shape index: {}]
  %s7 = inlined_call_operand.vmem [shape: f32[8,1024], index: 7, kind: output, shape index: {}]
  %s8 = sld [smem:[#allocation0]]
  $region77: #{forward.1} parent=0
    _
  %s10 = ssub.s32 1, %s8
  %s11 = scalar_select 0, %s10, %s8
  $region1: #{forward.1} parent=0
    #allocation2 [shape = 'u8[65536]{0}', space=vmem, size = 0x10000, scoped, tag = 'input window, operand 1, single buffered']
    #allocation3 [shape = 's32[2]{0}', space=sflag, size = 0x8, scoped, tag = 'scoped memory for forward.1']
    #allocation4 [shape = 'u8[65536]{0}', space=vmem, size = 0x10000, scoped, tag = 'input window, operand 2, single buffered']
    #allocation5 [shape = 's32[1]{0}', space=sflag, size = 0x4, scoped, tag = 'scoped memory for forward.1']
    #allocation6 [shape = 'u8[65536]{0}', space=vmem, size = 0x10000, scoped, tag = 'input window, operand 3, single buffered']
    #allocation7 [shape = 'u8[65536]{0}', space=vmem, size = 0x10000, scoped, tag = 'input window, operand 4, single buffered']
    #allocation8 [shape = 's32[1]{0}', space=sflag, size = 0x4, scoped, tag = 'scoped memory for forward.1']
    %12 = vsyncpa [#allocation3], 0
    %13 = vsyncpa [#allocation5], 0
    %14 = vsyncpa [#allocation8], 0
    loop: start=0, step=1, limit=4
    $region2: #{forward.1} parent=1 // loop_pre_header
      _
    $region3: #{forward.1} parent=1 // loop_header
      %s16 = sphi 0, %s20
      %p17 = scmp.ge.s32.totalorder %s16, 4
      %s26 = sphi 0, %s28
      %s29 = sphi 0, %s26
      %s30 = sphi 0, %s29
      %s46 = sphi 0, %s30
      %s50 = sphi 0, %s50
      %s52 = sphi 0, %s50
      %s53 = sphi 0, %s52
      %s67 = sphi 0, %s53
      %s71 = sphi 0, %s71
      %s73 = sphi 0, %s71
      %s74 = sphi 0, %s73
      %s88 = sphi 0, %s74
      %s92 = sphi 0, %s92
      %s94 = sphi 0, %s92
      %s95 = sphi 0, %s94
      %s109 = sphi 0, %s95
      %s113 = sphi 0, %s113
      %s115 = sphi 0, %s113
      %s116 = sphi 0, %s115
      %s130 = sphi 0, %s116
      %s134 = sphi 0, %s134
      %s136 = sphi 0, %s134
      %s137 = sphi 0, %s136
      %s151 = sphi 0, %s137
      %s155 = sphi 0, %s155
      %s157 = sphi 0, %s155
      %s158 = sphi 0, %s157
      %s172 = sphi 0, %s158
      %s178 = sphi 0, %s180
      %s181 = sphi 0, %s178
      %s182 = sphi 0, %s181
      %s198 = sphi 0, %s182
    $region4: #{forward.1} parent=1 // loop_header_branch
      %19 = sbr.rel (%p17) target = $region8
    $region5: #{forward.1} parent=1 // loop_body
      %s21 = ssub.s32 %s16, 1
      %s22 = ssub.s32 %s16, 2
      %s23 = sadd.s32 %s16, 1
      %s24 = ssub.s32 %s16, %s23
      %p25 = scmp.eq.s32.totalorder %s24, 0
      %s27 = sadd.s32 %s26, 1
      %s28 = scalar_select %p25, %s26, %s27
      %p31 = pneg %p25
      %p32 = scmp.eq.s32.totalorder %s16, 1
      %p33 = por %p31, %p32
      %p34 = scmp.ne.s32.totalorder %s26, %s29
      %p35 = scmp.eq.s32.totalorder %s16, 0
      %p36 = por %p34, %p35
      %p37 = scmp.ne.s32.totalorder %s26, %s29
      %p38 = scmp.eq.s32.totalorder %s21, 1
      %p39 = por %p37, %p38
      %p40 = scmp.ne.s32.totalorder %s29, %s30
      %p41 = scmp.eq.s32.totalorder %s21, 0
      %p42 = por %p40, %p41
      %p43 = scmp.ne.s32.totalorder %s29, %s30
      %p44 = scmp.eq.s32.totalorder %s22, 1
      %p45 = por %p43, %p44
      %p47 = scmp.ne.s32.totalorder %s30, %s46
      %p48 = scmp.eq.s32.totalorder %s22, 0
      %p49 = por %p47, %p48
      %s51 = sadd.s32 %s50, 1
      %p54 = scmp.eq.s32.totalorder %s16, 1
      %p55 = scmp.ne.s32.totalorder %s50, %s52
      %p56 = scmp.eq.s32.totalorder %s16, 0
      %p57 = por %p55, %p56
      %p58 = scmp.ne.s32.totalorder %s50, %s52
      %p59 = scmp.eq.s32.totalorder %s21, 1
      %p60 = por %p58, %p59
      %p61 = scmp.ne.s32.totalorder %s52, %s53
      %p62 = scmp.eq.s32.totalorder %s21, 0
      %p63 = por %p61, %p62
      %p64 = scmp.ne.s32.totalorder %s52, %s53
      %p65 = scmp.eq.s32.totalorder %s22, 1
      %p66 = por %p64, %p65
      %p68 = scmp.ne.s32.totalorder %s53, %s67
      %p69 = scmp.eq.s32.totalorder %s22, 0
      %p70 = por %p68, %p69
      %s72 = sadd.s32 %s71, 1
      %p75 = scmp.eq.s32.totalorder %s16, 1
      %p76 = scmp.ne.s32.totalorder %s71, %s73
      %p77 = scmp.eq.s32.totalorder %s16, 0
      %p78 = por %p76, %p77
      %p79 = scmp.ne.s32.totalorder %s71, %s73
      %p80 = scmp.eq.s32.totalorder %s21, 1
      %p81 = por %p79, %p80
      %p82 = scmp.ne.s32.totalorder %s73, %s74
      %p83 = scmp.eq.s32.totalorder %s21, 0
      %p84 = por %p82, %p83
      %p85 = scmp.ne.s32.totalorder %s73, %s74
      %p86 = scmp.eq.s32.totalorder %s22, 1
      %p87 = por %p85, %p86
      %p89 = scmp.ne.s32.totalorder %s74, %s88
      %p90 = scmp.eq.s32.totalorder %s22, 0
      %p91 = por %p89, %p90
      %s93 = sadd.s32 %s92, 1
      %p96 = scmp.eq.s32.totalorder %s16, 1
      %p97 = scmp.ne.s32.totalorder %s92, %s94
      %p98 = scmp.eq.s32.totalorder %s16, 0
      %p99 = por %p97, %p98
      %p100 = scmp.ne.s32.totalorder %s92, %s94
      %p101 = scmp.eq.s32.totalorder %s21, 1
      %p102 = por %p100, %p101
      %p103 = scmp.ne.s32.totalorder %s94, %s95
      %p104 = scmp.eq.s32.totalorder %s21, 0
      %p105 = por %p103, %p104
      %p106 = scmp.ne.s32.totalorder %s94, %s95
      %p107 = scmp.eq.s32.totalorder %s22, 1
      %p108 = por %p106, %p107
      %p110 = scmp.ne.s32.totalorder %s95, %s109
      %p111 = scmp.eq.s32.totalorder %s22, 0
      %p112 = por %p110, %p111
      %s114 = sadd.s32 %s113, 1
      %p117 = scmp.eq.s32.totalorder %s16, 1
      %p118 = scmp.ne.s32.totalorder %s113, %s115
      %p119 = scmp.eq.s32.totalorder %s16, 0
      %p120 = por %p118, %p119
      %p121 = scmp.ne.s32.totalorder %s113, %s115
      %p122 = scmp.eq.s32.totalorder %s21, 1
      %p123 = por %p121, %p122
      %p124 = scmp.ne.s32.totalorder %s115, %s116
      %p125 = scmp.eq.s32.totalorder %s21, 0
      %p126 = por %p124, %p125
      %p127 = scmp.ne.s32.totalorder %s115, %s116
      %p128 = scmp.eq.s32.totalorder %s22, 1
      %p129 = por %p127, %p128
      %p131 = scmp.ne.s32.totalorder %s116, %s130
      %p132 = scmp.eq.s32.totalorder %s22, 0
      %p133 = por %p131, %p132
      %s135 = sadd.s32 %s134, 1
      %p138 = scmp.eq.s32.totalorder %s16, 1
      %p139 = scmp.ne.s32.totalorder %s134, %s136
      %p140 = scmp.eq.s32.totalorder %s16, 0
      %p141 = por %p139, %p140
      %p142 = scmp.ne.s32.totalorder %s134, %s136
      %p143 = scmp.eq.s32.totalorder %s21, 1
      %p144 = por %p142, %p143
      %p145 = scmp.ne.s32.totalorder %s136, %s137
      %p146 = scmp.eq.s32.totalorder %s21, 0
      %p147 = por %p145, %p146
      %p148 = scmp.ne.s32.totalorder %s136, %s137
      %p149 = scmp.eq.s32.totalorder %s22, 1
      %p150 = por %p148, %p149
      %p152 = scmp.ne.s32.totalorder %s137, %s151
      %p153 = scmp.eq.s32.totalorder %s22, 0
      %p154 = por %p152, %p153
      %s156 = sadd.s32 %s155, 1
      %p159 = scmp.eq.s32.totalorder %s16, 1
      %p160 = scmp.ne.s32.totalorder %s155, %s157
      %p161 = scmp.eq.s32.totalorder %s16, 0
      %p162 = por %p160, %p161
      %p163 = scmp.ne.s32.totalorder %s155, %s157
      %p164 = scmp.eq.s32.totalorder %s21, 1
      %p165 = por %p163, %p164
      %p166 = scmp.ne.s32.totalorder %s157, %s158
      %p167 = scmp.eq.s32.totalorder %s21, 0
      %p168 = por %p166, %p167
      %p169 = scmp.ne.s32.totalorder %s157, %s158
      %p170 = scmp.eq.s32.totalorder %s22, 1
      %p171 = por %p169, %p170
      %p173 = scmp.ne.s32.totalorder %s158, %s172
      %p174 = scmp.eq.s32.totalorder %s22, 0
      %p175 = por %p173, %p174
      %s176 = ssub.s32 %s16, %s23
      %p177 = scmp.eq.s32.totalorder %s176, 0
      %s179 = sadd.s32 %s178, 1
      %s180 = scalar_select %p177, %s178, %s179
      %p183 = pneg %p177
      %p184 = scmp.eq.s32.totalorder %s16, 1
      %p185 = por %p183, %p184
      %p186 = scmp.ne.s32.totalorder %s178, %s181
      %p187 = scmp.eq.s32.totalorder %s16, 0
      %p188 = por %p186, %p187
      %p189 = scmp.ne.s32.totalorder %s178, %s181
      %p190 = scmp.eq.s32.totalorder %s21, 1
      %p191 = por %p189, %p190
      %p192 = scmp.ne.s32.totalorder %s181, %s182
      %p193 = scmp.eq.s32.totalorder %s21, 0
      %p194 = por %p192, %p193
      %p195 = scmp.ne.s32.totalorder %s181, %s182
      %p196 = scmp.eq.s32.totalorder %s22, 1
      %p197 = por %p195, %p196
      %p199 = scmp.ne.s32.totalorder %s182, %s198
      %p200 = scmp.eq.s32.totalorder %s22, 0
      %p201 = por %p199, %p200
      %p202 = scmp.le.s32.totalorder 1, %s16
      %p203 = scmp.lt.s32.totalorder %s16, 3
      %p204 = pnand %p202, %p203
      %p205 = pneg %p204
      // Predicated region
      $region9: #{forward.1} parent=5 // pred_check
        _
      $region10: #{forward.1} parent=5 // pred_check_branch
        %207 = sbr.rel (%p204) target = $region12
      $region11: #{forward.1} parent=5 // pred_region
        %s208 = ssub.s32 %s16, 1
        // Predicated region
        $region13: #{forward.1} parent=11 // pred_check
          %p209 = pneg %p63
        $region14: #{forward.1} parent=11 // pred_check_branch
          %211 = sbr.rel (%p209) target = $region16
        $region15: #{forward.1} parent=11 // pred_region
          %213 = vsyncadd [#allocation3], 0
          %s214 = sshll.u32 %s1, 4
          %s215 = int_to_ptr.hbm [resolvable:$true] %s214
          %s216 = sshll.u32 [#allocation2], 4
          %s217 = int_to_ptr.vmem [resolvable:$true] %s216
          %222 = dma.hbm_to_vmem [thread:$0]  %s215, 2048, %s217, [#allocation3], 128, 128, 8
        $region16: #{forward.1} parent=11 // pred_fallthru
          _
        // Predicated region
        $region17: #{forward.1} parent=11 // pred_check
          %p223 = pneg %p84
        $region18: #{forward.1} parent=11 // pred_check_branch
          %225 = sbr.rel (%p223) target = $region20
        $region19: #{forward.1} parent=11 // pred_region
          %227 = vsyncadd [#allocation5], 0
          %s228 = sshll.u32 %s2, 4
          %s229 = int_to_ptr.hbm [resolvable:$true] %s228
          %s230 = sshll.u32 [#allocation4], 4
          %s231 = int_to_ptr.vmem [resolvable:$true] %s230
          %236 = dma.hbm_to_vmem [thread:$0]  %s229, 2048, %s231, [#allocation5], 128, 128, 8
        $region20: #{forward.1} parent=11 // pred_fallthru
          _
        // Predicated region
        $region21: #{forward.1} parent=11 // pred_check
          %p237 = pneg %p105
        $region22: #{forward.1} parent=11 // pred_check_branch
          %239 = sbr.rel (%p237) target = $region24
        $region23: #{forward.1} parent=11 // pred_region
          %241 = vsyncadd [#allocation5], 0
          %s242 = sshll.u32 %s3, 4
          %s243 = int_to_ptr.hbm [resolvable:$true] %s242
          %s244 = sshll.u32 [#allocation6], 4
          %s245 = int_to_ptr.vmem [resolvable:$true] %s244
          %250 = dma.hbm_to_vmem [thread:$0]  %s243, 2048, %s245, [#allocation5], 128, 128, 8
        $region24: #{forward.1} parent=11 // pred_fallthru
          _
        // Predicated region
        $region25: #{forward.1} parent=11 // pred_check
          %p251 = pneg %p126
        $region26: #{forward.1} parent=11 // pred_check_branch
          %253 = sbr.rel (%p251) target = $region28
        $region27: #{forward.1} parent=11 // pred_region
          %255 = vsyncadd [#allocation8], 0
          %s256 = sshll.u32 %s4, 4
          %s257 = int_to_ptr.hbm [resolvable:$true] %s256
          %s258 = sshll.u32 [#allocation7], 4
          %s259 = int_to_ptr.vmem [resolvable:$true] %s258
          %264 = dma.hbm_to_vmem [thread:$0]  %s257, 2048, %s259, [#allocation8], 128, 128, 8
        $region28: #{forward.1} parent=11 // pred_fallthru
          _
        // Predicated region
        $region29: #{forward.1} parent=11 // pred_check
          %p265 = pneg %p147
        $region30: #{forward.1} parent=11 // pred_check_branch
          %267 = sbr.rel (%p265) target = $region32
        $region31: #{forward.1} parent=11 // pred_region
          _
        $region32: #{forward.1} parent=11 // pred_fallthru
          _
        // Predicated region
        $region33: #{forward.1} parent=11 // pred_check
          %p268 = pneg %p168
        $region34: #{forward.1} parent=11 // pred_check_branch
          %270 = sbr.rel (%p268) target = $region36
        $region35: #{forward.1} parent=11 // pred_region
          _
        $region36: #{forward.1} parent=11 // pred_fallthru
          _
      $region12: #{forward.1} parent=5 // pred_fallthru
        _
      %p271 = scmp.lt.s32.totalorder %s16, 2
      // Predicated region
      $region37: #{forward.1} parent=5 // pred_check
        %p272 = pneg %p271
      $region38: #{forward.1} parent=5 // pred_check_branch
        %274 = sbr.rel (%p272) target = $region40
      $region39: #{forward.1} parent=5 // pred_region
        // Predicated region
        $region41: #{forward.1} parent=39 // pred_check
          %p275 = pneg %p36
        $region42: #{forward.1} parent=39 // pred_check_branch
          %277 = sbr.rel (%p275) target = $region44
        $region43: #{forward.1} parent=39 // pred_region
          %s278 = smul.u32 4, %s16
          %p279 = scmp.lt.s32.totalorder %s278, 7
          %s280 = scalar_select %p279, %s278, 7
          %s281 = scalar_lea.vmem %s0, %s280
          %s282 = smul.u32 4, %s16
        $region44: #{forward.1} parent=39 // pred_fallthru
          _
      $region40: #{forward.1} parent=5 // pred_fallthru
        _
      %p283 = scmp.le.s32.totalorder 1, %s16
      %p284 = scmp.lt.s32.totalorder %s16, 3
      %p285 = pnand %p283, %p284
      %p286 = pneg %p285
      // Predicated region
      $region45: #{forward.1} parent=5 // pred_check
        _
      $region46: #{forward.1} parent=5 // pred_check_branch
        %288 = sbr.rel (%p285) target = $region48
      $region47: #{forward.1} parent=5 // pred_region
        %s289 = ssub.s32 %s16, 1
        // Predicated region
        $region49: #{forward.1} parent=47 // pred_check
          %p290 = pneg %p63
        $region50: #{forward.1} parent=47 // pred_check_branch
          %292 = sbr.rel (%p290) target = $region52
        $region51: #{forward.1} parent=47 // pred_region
          %294 = dma.done [#allocation3], 2048
        $region52: #{forward.1} parent=47 // pred_fallthru
          _
        // Predicated region
        $region53: #{forward.1} parent=47 // pred_check
          %p295 = pneg %p84
        $region54: #{forward.1} parent=47 // pred_check_branch
          %297 = sbr.rel (%p295) target = $region56
        $region55: #{forward.1} parent=47 // pred_region
          %299 = dma.done [#allocation5], 2048
        $region56: #{forward.1} parent=47 // pred_fallthru
          _
        // Predicated region
        $region57: #{forward.1} parent=47 // pred_check
          %p300 = pneg %p105
        $region58: #{forward.1} parent=47 // pred_check_branch
          %302 = sbr.rel (%p300) target = $region60
        $region59: #{forward.1} parent=47 // pred_region
          %304 = dma.done [#allocation5], 2048
        $region60: #{forward.1} parent=47 // pred_fallthru
          _
        // Predicated region
        $region61: #{forward.1} parent=47 // pred_check
          %p305 = pneg %p126
        $region62: #{forward.1} parent=47 // pred_check_branch
          %307 = sbr.rel (%p305) target = $region64
        $region63: #{forward.1} parent=47 // pred_region
          %309 = dma.done [#allocation8], 2048
        $region64: #{forward.1} parent=47 // pred_fallthru
          _
        %s310 = smul.u32 4, %s21
        %p311 = scmp.lt.s32.totalorder %s310, 7
        %s312 = scalar_select %p311, %s310, 7
        %s313 = scalar_lea.vmem %s0, %s312
        %p314 = pneg %p42
        %p315 = pneg %p39
        %p316 = pneg %p63
        %p317 = pneg %p60
        %p318 = pneg %p84
        %p319 = pneg %p81
        %p320 = pneg %p105
        %p321 = pneg %p102
        %p322 = pneg %p126
        %p323 = pneg %p123
        %p324 = pneg %p147
        %p325 = pneg %p144
        %p326 = pneg %p168
        %p327 = pneg %p165
        %p328 = pneg %p194
        %p329 = pneg %p191
        %s330 = smul.u32 4, %s21
        %p331 = scmp.lt.s32.totalorder %s330, 7
        %s332 = scalar_select %p331, %s330, 7
        %s333 = smul.addr %s332, 8
        %s334 = scalar_lea.vmem %s7, %s333
        %s335 = smul.u32 4, %s21
        %p336 = scmp.lt.s32.totalorder %s335, 7
        %s337 = scalar_select %p336, %s335, 7
        %s338 = scalar_lea.vmem %s0, %s337
        %s339 = smul.u32 4, %s21
        %s340 = smul.u32 4, %s21
        %p341 = scmp.lt.s32.totalorder %s340, 7
        %s342 = scalar_select %p341, %s340, 7
        %s343 = smul.addr %s342, 8
        %s344 = scalar_lea.vmem %s7, %s343
        %s345 = smul.u32 4, %s21
        %v346 = vld [vmem:[%s338] sm:$0xf]
        %v347 = vld [vmem:[#allocation2] sm:$0xff]
        %v348 = vld [vmem:[#allocation2 + $0x8] sm:$0xff]
        %v349 = vld [vmem:[#allocation2 + $0x10] sm:$0xff]
        %v350 = vld [vmem:[#allocation2 + $0x18] sm:$0xff]
        %v351 = vld [vmem:[#allocation2 + $0x20] sm:$0xff]
        %v352 = vld [vmem:[#allocation2 + $0x28] sm:$0xff]
        %v353 = vld [vmem:[#allocation2 + $0x30] sm:$0xff]
        %v354 = vld [vmem:[#allocation2 + $0x38] sm:$0xff]
        %v355 = vld [vmem:[#allocation2 + $0x40] sm:$0xff]
        %v356 = vld [vmem:[#allocation2 + $0x48] sm:$0xff]
        %v357 = vld [vmem:[#allocation2 + $0x50] sm:$0xff]
        %v358 = vld [vmem:[#allocation2 + $0x58] sm:$0xff]
        %v359 = vld [vmem:[#allocation2 + $0x60] sm:$0xff]
        %v360 = vld [vmem:[#allocation2 + $0x68] sm:$0xff]
        %v361 = vld [vmem:[#allocation2 + $0x70] sm:$0xff]
        %v362 = vld [vmem:[#allocation2 + $0x78] sm:$0xff]
        %364 = vset.pattern.permute.xlu0 0
        %365 = vperm.xlu0 %364, %v347
        %v366 = vpop.permute.xlu0 %365
        %369 = vset.pattern.permute.xlu0 0
        %370 = vperm.xlu0 %369, %v348
        %v371 = vpop.permute.xlu0 %370
        %374 = vset.pattern.permute.xlu0 0
        %375 = vperm.xlu0 %374, %v349
        %v376 = vpop.permute.xlu0 %375
        %379 = vset.pattern.permute.xlu0 0
        %380 = vperm.xlu0 %379, %v350
        %v381 = vpop.permute.xlu0 %380
        %384 = vset.pattern.permute.xlu0 0
        %385 = vperm.xlu0 %384, %v351
        %v386 = vpop.permute.xlu0 %385
        %389 = vset.pattern.permute.xlu0 0
        %390 = vperm.xlu0 %389, %v352
        %v391 = vpop.permute.xlu0 %390
        %394 = vset.pattern.permute.xlu0 0
        %395 = vperm.xlu0 %394, %v353
        %v396 = vpop.permute.xlu0 %395
        %399 = vset.pattern.permute.xlu0 0
        %400 = vperm.xlu0 %399, %v354
        %v401 = vpop.permute.xlu0 %400
        %404 = vset.pattern.permute.xlu0 0
        %405 = vperm.xlu0 %404, %v355
        %v406 = vpop.permute.xlu0 %405
        %409 = vset.pattern.permute.xlu0 0
        %410 = vperm.xlu0 %409, %v356
        %v411 = vpop.permute.xlu0 %410
        %414 = vset.pattern.permute.xlu0 0
        %415 = vperm.xlu0 %414, %v357
        %v416 = vpop.permute.xlu0 %415
        %419 = vset.pattern.permute.xlu0 0
        %420 = vperm.xlu0 %419, %v358
        %v421 = vpop.permute.xlu0 %420
        %424 = vset.pattern.permute.xlu0 0
        %425 = vperm.xlu0 %424, %v359
        %v426 = vpop.permute.xlu0 %425
        %429 = vset.pattern.permute.xlu0 0
        %430 = vperm.xlu0 %429, %v360
        %v431 = vpop.permute.xlu0 %430
        %434 = vset.pattern.permute.xlu0 0
        %435 = vperm.xlu0 %434, %v361
        %v436 = vpop.permute.xlu0 %435
        %439 = vset.pattern.permute.xlu0 0
        %440 = vperm.xlu0 %439, %v362
        %v441 = vpop.permute.xlu0 %440
        %v444 = vperm.slane %v346, 0
        %v445 = vperm.slane %v346, 1
        %v446 = vperm.slane %v346, 2
        %v447 = vperm.slane %v346, 3
        %v452 = vmul.f32 %v366, %v444
        %v453 = vmul.f32 %v366, %v445
        %v454 = vmul.f32 %v366, %v446
        %v455 = vmul.f32 %v366, %v447
        %v456 = vmul.f32 %v371, %v444
        %v457 = vmul.f32 %v371, %v445
        %v458 = vmul.f32 %v371, %v446
        %v459 = vmul.f32 %v371, %v447
        %v460 = vmul.f32 %v376, %v444
        %v461 = vmul.f32 %v376, %v445
        %v462 = vmul.f32 %v376, %v446
        %v463 = vmul.f32 %v376, %v447
        %v464 = vmul.f32 %v381, %v444
        %v465 = vmul.f32 %v381, %v445
        %v466 = vmul.f32 %v381, %v446
        %v467 = vmul.f32 %v381, %v447
        %v468 = vmul.f32 %v386, %v444
        %v469 = vmul.f32 %v386, %v445
        %v470 = vmul.f32 %v386, %v446
        %v471 = vmul.f32 %v386, %v447
        %v472 = vmul.f32 %v391, %v444
        %v473 = vmul.f32 %v391, %v445
        %v474 = vmul.f32 %v391, %v446
        %v475 = vmul.f32 %v391, %v447
        %v476 = vmul.f32 %v396, %v444
        %v477 = vmul.f32 %v396, %v445
        %v478 = vmul.f32 %v396, %v446
        %v479 = vmul.f32 %v396, %v447
        %v480 = vmul.f32 %v401, %v444
        %v481 = vmul.f32 %v401, %v445
        %v482 = vmul.f32 %v401, %v446
        %v483 = vmul.f32 %v401, %v447
        %v484 = vmul.f32 %v406, %v444
        %v485 = vmul.f32 %v406, %v445
        %v486 = vmul.f32 %v406, %v446
        %v487 = vmul.f32 %v406, %v447
        %v488 = vmul.f32 %v411, %v444
        %v489 = vmul.f32 %v411, %v445
        %v490 = vmul.f32 %v411, %v446
        %v491 = vmul.f32 %v411, %v447
        %v492 = vmul.f32 %v416, %v444
        %v493 = vmul.f32 %v416, %v445
        %v494 = vmul.f32 %v416, %v446
        %v495 = vmul.f32 %v416, %v447
        %v496 = vmul.f32 %v421, %v444
        %v497 = vmul.f32 %v421, %v445
        %v498 = vmul.f32 %v421, %v446
        %v499 = vmul.f32 %v421, %v447
        %v500 = vmul.f32 %v426, %v444
        %v501 = vmul.f32 %v426, %v445
        %v502 = vmul.f32 %v426, %v446
        %v503 = vmul.f32 %v426, %v447
        %v504 = vmul.f32 %v431, %v444
        %v505 = vmul.f32 %v431, %v445
        %v506 = vmul.f32 %v431, %v446
        %v507 = vmul.f32 %v431, %v447
        %v508 = vmul.f32 %v436, %v444
        %v509 = vmul.f32 %v436, %v445
        %v510 = vmul.f32 %v436, %v446
        %v511 = vmul.f32 %v436, %v447
        %v512 = vmul.f32 %v441, %v444
        %v513 = vmul.f32 %v441, %v445
        %v514 = vmul.f32 %v441, %v446
        %v515 = vmul.f32 %v441, %v447
        %v516 = vld [vmem:[#allocation4] sm:$0xff]
        %v517 = vld [vmem:[#allocation4 + $0x8] sm:$0xff]
        %v518 = vld [vmem:[#allocation4 + $0x10] sm:$0xff]
        %v519 = vld [vmem:[#allocation4 + $0x18] sm:$0xff]
        %v520 = vld [vmem:[#allocation4 + $0x20] sm:$0xff]
        %v521 = vld [vmem:[#allocation4 + $0x28] sm:$0xff]
        %v522 = vld [vmem:[#allocation4 + $0x30] sm:$0xff]
        %v523 = vld [vmem:[#allocation4 + $0x38] sm:$0xff]
        %v524 = vld [vmem:[#allocation4 + $0x40] sm:$0xff]
        %v525 = vld [vmem:[#allocation4 + $0x48] sm:$0xff]
        %v526 = vld [vmem:[#allocation4 + $0x50] sm:$0xff]
        %v527 = vld [vmem:[#allocation4 + $0x58] sm:$0xff]
        %v528 = vld [vmem:[#allocation4 + $0x60] sm:$0xff]
        %v529 = vld [vmem:[#allocation4 + $0x68] sm:$0xff]
        %v530 = vld [vmem:[#allocation4 + $0x70] sm:$0xff]
        %v531 = vld [vmem:[#allocation4 + $0x78] sm:$0xff]
        %533 = vset.pattern.permute.xlu0 0
        %534 = vperm.xlu0 %533, %v516
        %v535 = vpop.permute.xlu0 %534
        %538 = vset.pattern.permute.xlu0 0
        %539 = vperm.xlu0 %538, %v517
        %v540 = vpop.permute.xlu0 %539
        %543 = vset.pattern.permute.xlu0 0
        %544 = vperm.xlu0 %543, %v518
        %v545 = vpop.permute.xlu0 %544
        %548 = vset.pattern.permute.xlu0 0
        %549 = vperm.xlu0 %548, %v519
        %v550 = vpop.permute.xlu0 %549
        %553 = vset.pattern.permute.xlu0 0
        %554 = vperm.xlu0 %553, %v520
        %v555 = vpop.permute.xlu0 %554
        %558 = vset.pattern.permute.xlu0 0
        %559 = vperm.xlu0 %558, %v521
        %v560 = vpop.permute.xlu0 %559
        %563 = vset.pattern.permute.xlu0 0
        %564 = vperm.xlu0 %563, %v522
        %v565 = vpop.permute.xlu0 %564
        %568 = vset.pattern.permute.xlu0 0
        %569 = vperm.xlu0 %568, %v523
        %v570 = vpop.permute.xlu0 %569
        %573 = vset.pattern.permute.xlu0 0
        %574 = vperm.xlu0 %573, %v524
        %v575 = vpop.permute.xlu0 %574
        %578 = vset.pattern.permute.xlu0 0
        %579 = vperm.xlu0 %578, %v525
        %v580 = vpop.permute.xlu0 %579
        %583 = vset.pattern.permute.xlu0 0
        %584 = vperm.xlu0 %583, %v526
        %v585 = vpop.permute.xlu0 %584
        %588 = vset.pattern.permute.xlu0 0
        %589 = vperm.xlu0 %588, %v527
        %v590 = vpop.permute.xlu0 %589
        %593 = vset.pattern.permute.xlu0 0
        %594 = vperm.xlu0 %593, %v528
        %v595 = vpop.permute.xlu0 %594
        %598 = vset.pattern.permute.xlu0 0
        %599 = vperm.xlu0 %598, %v529
        %v600 = vpop.permute.xlu0 %599
        %603 = vset.pattern.permute.xlu0 0
        %604 = vperm.xlu0 %603, %v530
        %v605 = vpop.permute.xlu0 %604
        %608 = vset.pattern.permute.xlu0 0
        %609 = vperm.xlu0 %608, %v531
        %v610 = vpop.permute.xlu0 %609
        %v612 = vadd.f32 %v452, %v535
        %v613 = vadd.f32 %v453, %v535
        %v614 = vadd.f32 %v454, %v535
        %v615 = vadd.f32 %v455, %v535
        %v616 = vadd.f32 %v456, %v540
        %v617 = vadd.f32 %v457, %v540
        %v618 = vadd.f32 %v458, %v540
        %v619 = vadd.f32 %v459, %v540
        %v620 = vadd.f32 %v460, %v545
        %v621 = vadd.f32 %v461, %v545
        %v622 = vadd.f32 %v462, %v545
        %v623 = vadd.f32 %v463, %v545
        %v624 = vadd.f32 %v464, %v550
        %v625 = vadd.f32 %v465, %v550
        %v626 = vadd.f32 %v466, %v550
        %v627 = vadd.f32 %v467, %v550
        %v628 = vadd.f32 %v468, %v555
        %v629 = vadd.f32 %v469, %v555
        %v630 = vadd.f32 %v470, %v555
        %v631 = vadd.f32 %v471, %v555
        %v632 = vadd.f32 %v472, %v560
        %v633 = vadd.f32 %v473, %v560
        %v634 = vadd.f32 %v474, %v560
        %v635 = vadd.f32 %v475, %v560
        %v636 = vadd.f32 %v476, %v565
        %v637 = vadd.f32 %v477, %v565
        %v638 = vadd.f32 %v478, %v565
        %v639 = vadd.f32 %v479, %v565
        %v640 = vadd.f32 %v480, %v570
        %v641 = vadd.f32 %v481, %v570
        %v642 = vadd.f32 %v482, %v570
        %v643 = vadd.f32 %v483, %v570
        %v644 = vadd.f32 %v484, %v575
        %v645 = vadd.f32 %v485, %v575
        %v646 = vadd.f32 %v486, %v575
        %v647 = vadd.f32 %v487, %v575
        %v648 = vadd.f32 %v488, %v580
        %v649 = vadd.f32 %v489, %v580
        %v650 = vadd.f32 %v490, %v580
        %v651 = vadd.f32 %v491, %v580
        %v652 = vadd.f32 %v492, %v585
        %v653 = vadd.f32 %v493, %v585
        %v654 = vadd.f32 %v494, %v585
        %v655 = vadd.f32 %v495, %v585
        %v656 = vadd.f32 %v496, %v590
        %v657 = vadd.f32 %v497, %v590
        %v658 = vadd.f32 %v498, %v590
        %v659 = vadd.f32 %v499, %v590
        %v660 = vadd.f32 %v500, %v595
        %v661 = vadd.f32 %v501, %v595
        %v662 = vadd.f32 %v502, %v595
        %v663 = vadd.f32 %v503, %v595
        %v664 = vadd.f32 %v504, %v600
        %v665 = vadd.f32 %v505, %v600
        %v666 = vadd.f32 %v506, %v600
        %v667 = vadd.f32 %v507, %v600
        %v668 = vadd.f32 %v508, %v605
        %v669 = vadd.f32 %v509, %v605
        %v670 = vadd.f32 %v510, %v605
        %v671 = vadd.f32 %v511, %v605
        %v672 = vadd.f32 %v512, %v610
        %v673 = vadd.f32 %v513, %v610
        %v674 = vadd.f32 %v514, %v610
        %v675 = vadd.f32 %v515, %v610
        %v676 = vtanh.pop %v612
        %v677 = vtanh.pop %v613
        %v678 = vtanh.pop %v614
        %v679 = vtanh.pop %v615
        %v680 = vtanh.pop %v616
        %v681 = vtanh.pop %v617
        %v682 = vtanh.pop %v618
        %v683 = vtanh.pop %v619
        %v684 = vtanh.pop %v620
        %v685 = vtanh.pop %v621
        %v686 = vtanh.pop %v622
        %v687 = vtanh.pop %v623
        %v688 = vtanh.pop %v624
        %v689 = vtanh.pop %v625
        %v690 = vtanh.pop %v626
        %v691 = vtanh.pop %v627
        %v692 = vtanh.pop %v628
        %v693 = vtanh.pop %v629
        %v694 = vtanh.pop %v630
        %v695 = vtanh.pop %v631
        %v696 = vtanh.pop %v632
        %v697 = vtanh.pop %v633
        %v698 = vtanh.pop %v634
        %v699 = vtanh.pop %v635
        %v700 = vtanh.pop %v636
        %v701 = vtanh.pop %v637
        %v702 = vtanh.pop %v638
        %v703 = vtanh.pop %v639
        %v704 = vtanh.pop %v640
        %v705 = vtanh.pop %v641
        %v706 = vtanh.pop %v642
        %v707 = vtanh.pop %v643
        %v708 = vtanh.pop %v644
        %v709 = vtanh.pop %v645
        %v710 = vtanh.pop %v646
        %v711 = vtanh.pop %v647
        %v712 = vtanh.pop %v648
        %v713 = vtanh.pop %v649
        %v714 = vtanh.pop %v650
        %v715 = vtanh.pop %v651
        %v716 = vtanh.pop %v652
        %v717 = vtanh.pop %v653
        %v718 = vtanh.pop %v654
        %v719 = vtanh.pop %v655
        %v720 = vtanh.pop %v656
        %v721 = vtanh.pop %v657
        %v722 = vtanh.pop %v658
        %v723 = vtanh.pop %v659
        %v724 = vtanh.pop %v660
        %v725 = vtanh.pop %v661
        %v726 = vtanh.pop %v662
        %v727 = vtanh.pop %v663
        %v728 = vtanh.pop %v664
        %v729 = vtanh.pop %v665
        %v730 = vtanh.pop %v666
        %v731 = vtanh.pop %v667
        %v732 = vtanh.pop %v668
        %v733 = vtanh.pop %v669
        %v734 = vtanh.pop %v670
        %v735 = vtanh.pop %v671
        %v736 = vtanh.pop %v672
        %v737 = vtanh.pop %v673
        %v738 = vtanh.pop %v674
        %v739 = vtanh.pop %v675
        %v740 = vld [vmem:[#allocation6] sm:$0xff]
        %v741 = vld [vmem:[#allocation6 + $0x8] sm:$0xff]
        %v742 = vld [vmem:[#allocation6 + $0x10] sm:$0xff]
        %v743 = vld [vmem:[#allocation6 + $0x18] sm:$0xff]
        %v744 = vld [vmem:[#allocation6 + $0x20] sm:$0xff]
        %v745 = vld [vmem:[#allocation6 + $0x28] sm:$0xff]
        %v746 = vld [vmem:[#allocation6 + $0x30] sm:$0xff]
        %v747 = vld [vmem:[#allocation6 + $0x38] sm:$0xff]
        %v748 = vld [vmem:[#allocation6 + $0x40] sm:$0xff]
        %v749 = vld [vmem:[#allocation6 + $0x48] sm:$0xff]
        %v750 = vld [vmem:[#allocation6 + $0x50] sm:$0xff]
        %v751 = vld [vmem:[#allocation6 + $0x58] sm:$0xff]
        %v752 = vld [vmem:[#allocation6 + $0x60] sm:$0xff]
        %v753 = vld [vmem:[#allocation6 + $0x68] sm:$0xff]
        %v754 = vld [vmem:[#allocation6 + $0x70] sm:$0xff]
        %v755 = vld [vmem:[#allocation6 + $0x78] sm:$0xff]
        %v756 = vld [vmem:[#allocation7] sm:$0xff]
        %v757 = vld [vmem:[#allocation7 + $0x8] sm:$0xff]
        %v758 = vld [vmem:[#allocation7 + $0x10] sm:$0xff]
        %v759 = vld [vmem:[#allocation7 + $0x18] sm:$0xff]
        %v760 = vld [vmem:[#allocation7 + $0x20] sm:$0xff]
        %v761 = vld [vmem:[#allocation7 + $0x28] sm:$0xff]
        %v762 = vld [vmem:[#allocation7 + $0x30] sm:$0xff]
        %v763 = vld [vmem:[#allocation7 + $0x38] sm:$0xff]
        %v764 = vld [vmem:[#allocation7 + $0x40] sm:$0xff]
        %v765 = vld [vmem:[#allocation7 + $0x48] sm:$0xff]
        %v766 = vld [vmem:[#allocation7 + $0x50] sm:$0xff]
        %v767 = vld [vmem:[#allocation7 + $0x58] sm:$0xff]
        %v768 = vld [vmem:[#allocation7 + $0x60] sm:$0xff]
        %v769 = vld [vmem:[#allocation7 + $0x68] sm:$0xff]
        %v770 = vld [vmem:[#allocation7 + $0x70] sm:$0xff]
        %v771 = vld [vmem:[#allocation7 + $0x78] sm:$0xff]
        %773 = vset.pattern.permute.xlu0 0
        %774 = vperm.xlu0 %773, %v756
        %v775 = vpop.permute.xlu0 %774
        %778 = vset.pattern.permute.xlu0 0
        %779 = vperm.xlu0 %778, %v757
        %v780 = vpop.permute.xlu0 %779
        %783 = vset.pattern.permute.xlu0 0
        %784 = vperm.xlu0 %783, %v758
        %v785 = vpop.permute.xlu0 %784
        %788 = vset.pattern.permute.xlu0 0
        %789 = vperm.xlu0 %788, %v759
        %v790 = vpop.permute.xlu0 %789
        %793 = vset.pattern.permute.xlu0 0
        %794 = vperm.xlu0 %793, %v760
        %v795 = vpop.permute.xlu0 %794
        %798 = vset.pattern.permute.xlu0 0
        %799 = vperm.xlu0 %798, %v761
        %v800 = vpop.permute.xlu0 %799
        %803 = vset.pattern.permute.xlu0 0
        %804 = vperm.xlu0 %803, %v762
        %v805 = vpop.permute.xlu0 %804
        %808 = vset.pattern.permute.xlu0 0
        %809 = vperm.xlu0 %808, %v763
        %v810 = vpop.permute.xlu0 %809
        %813 = vset.pattern.permute.xlu0 0
        %814 = vperm.xlu0 %813, %v764
        %v815 = vpop.permute.xlu0 %814
        %818 = vset.pattern.permute.xlu0 0
        %819 = vperm.xlu0 %818, %v765
        %v820 = vpop.permute.xlu0 %819
        %823 = vset.pattern.permute.xlu0 0
        %824 = vperm.xlu0 %823, %v766
        %v825 = vpop.permute.xlu0 %824
        %828 = vset.pattern.permute.xlu0 0
        %829 = vperm.xlu0 %828, %v767
        %v830 = vpop.permute.xlu0 %829
        %833 = vset.pattern.permute.xlu0 0
        %834 = vperm.xlu0 %833, %v768
        %v835 = vpop.permute.xlu0 %834
        %838 = vset.pattern.permute.xlu0 0
        %839 = vperm.xlu0 %838, %v769
        %v840 = vpop.permute.xlu0 %839
        %843 = vset.pattern.permute.xlu0 0
        %844 = vperm.xlu0 %843, %v770
        %v845 = vpop.permute.xlu0 %844
        %848 = vset.pattern.permute.xlu0 0
        %849 = vperm.xlu0 %848, %v771
        %v850 = vpop.permute.xlu0 %849
        %852 = vmatpush.msra.mxu0 %v736
        %853 = vmatpush.msra.mxu0 %v732
        %854 = vmatpush.msra.mxu0 %v728
        %855 = vmatpush.msra.mxu0 %v724
        %856 = vmatpush.msra.mxu0 %v720
        %857 = vmatpush.msra.mxu0 %v716
        %858 = vmatpush.msra.mxu0 %v712
        %859 = vmatpush.msra.mxu0 %v708
        %860 = vmatpush.msra.mxu0 %v704
        %861 = vmatpush.msra.mxu0 %v700
        %862 = vmatpush.msra.mxu0 %v696
        %863 = vmatpush.msra.mxu0 %v692
        %864 = vmatpush.msra.mxu0 %v688
        %865 = vmatpush.msra.mxu0 %v684
        %866 = vmatpush.msra.mxu0 %v680
        %867 = vmatpush.msra.mxu0 %v676
        %868 = vmatmul.f32.gmra.mxu0 %v740
        %v869 = vpop.f32.mrf.mxu0
        %v870 = vadd.f32 %v775, %v869
        %871 = vmatmul.f32.gmra.mxu0 %v741
        %v872 = vpop.f32.mrf.mxu0
        %v873 = vadd.f32 %v780, %v872
        %874 = vmatmul.f32.gmra.mxu0 %v742
        %v875 = vpop.f32.mrf.mxu0
        %v876 = vadd.f32 %v785, %v875
        %877 = vmatmul.f32.gmra.mxu0 %v743
        %v878 = vpop.f32.mrf.mxu0
        %v879 = vadd.f32 %v790, %v878
        %880 = vmatmul.f32.gmra.mxu0 %v744
        %v881 = vpop.f32.mrf.mxu0
        %v882 = vadd.f32 %v795, %v881
        %883 = vmatmul.f32.gmra.mxu0 %v745
        %v884 = vpop.f32.mrf.mxu0
        %v885 = vadd.f32 %v800, %v884
        %886 = vmatmul.f32.gmra.mxu0 %v746
        %v887 = vpop.f32.mrf.mxu0
        %v888 = vadd.f32 %v805, %v887
        %889 = vmatmul.f32.gmra.mxu0 %v747
        %v890 = vpop.f32.mrf.mxu0
        %v891 = vadd.f32 %v810, %v890
        %892 = vmatmul.f32.gmra.mxu0 %v748
        %v893 = vpop.f32.mrf.mxu0
        %v894 = vadd.f32 %v815, %v893
        %895 = vmatmul.f32.gmra.mxu0 %v749
        %v896 = vpop.f32.mrf.mxu0
        %v897 = vadd.f32 %v820, %v896
        %898 = vmatmul.f32.gmra.mxu0 %v750
        %v899 = vpop.f32.mrf.mxu0
        %v900 = vadd.f32 %v825, %v899
        %901 = vmatmul.f32.gmra.mxu0 %v751
        %v902 = vpop.f32.mrf.mxu0
        %v903 = vadd.f32 %v830, %v902
        %904 = vmatmul.f32.gmra.mxu0 %v752
        %v905 = vpop.f32.mrf.mxu0
        %v906 = vadd.f32 %v835, %v905
        %907 = vmatmul.f32.gmra.mxu0 %v753
        %v908 = vpop.f32.mrf.mxu0
        %v909 = vadd.f32 %v840, %v908
        %910 = vmatmul.f32.gmra.mxu0 %v754
        %v911 = vpop.f32.mrf.mxu0
        %v912 = vadd.f32 %v845, %v911
        %913 = vmatmul.f32.gmra.mxu0 %v755
        %v914 = vpop.f32.mrf.mxu0
        %v915 = vadd.f32 %v850, %v914
        %916 = vdwg.mxu0
        %917 = vmatpush.msra.mxu0 %v737
        %918 = vmatpush.msra.mxu0 %v733
        %919 = vmatpush.msra.mxu0 %v729
        %920 = vmatpush.msra.mxu0 %v725
        %921 = vmatpush.msra.mxu0 %v721
        %922 = vmatpush.msra.mxu0 %v717
        %923 = vmatpush.msra.mxu0 %v713
        %924 = vmatpush.msra.mxu0 %v709
        %925 = vmatpush.msra.mxu0 %v705
        %926 = vmatpush.msra.mxu0 %v701
        %927 = vmatpush.msra.mxu0 %v697
        %928 = vmatpush.msra.mxu0 %v693
        %929 = vmatpush.msra.mxu0 %v689
        %930 = vmatpush.msra.mxu0 %v685
        %931 = vmatpush.msra.mxu0 %v681
        %932 = vmatpush.msra.mxu0 %v677
        %933 = vmatmul.f32.gmra.mxu0 %v740
        %v934 = vpop.f32.mrf.mxu0
        %v935 = vadd.f32 %v775, %v934
        %936 = vmatmul.f32.gmra.mxu0 %v741
        %v937 = vpop.f32.mrf.mxu0
        %v938 = vadd.f32 %v780, %v937
        %939 = vmatmul.f32.gmra.mxu0 %v742
        %v940 = vpop.f32.mrf.mxu0
        %v941 = vadd.f32 %v785, %v940
        %942 = vmatmul.f32.gmra.mxu0 %v743
        %v943 = vpop.f32.mrf.mxu0
        %v944 = vadd.f32 %v790, %v943
        %945 = vmatmul.f32.gmra.mxu0 %v744
        %v946 = vpop.f32.mrf.mxu0
        %v947 = vadd.f32 %v795, %v946
        %948 = vmatmul.f32.gmra.mxu0 %v745
        %v949 = vpop.f32.mrf.mxu0
        %v950 = vadd.f32 %v800, %v949
        %951 = vmatmul.f32.gmra.mxu0 %v746
        %v952 = vpop.f32.mrf.mxu0
        %v953 = vadd.f32 %v805, %v952
        %954 = vmatmul.f32.gmra.mxu0 %v747
        %v955 = vpop.f32.mrf.mxu0
        %v956 = vadd.f32 %v810, %v955
        %957 = vmatmul.f32.gmra.mxu0 %v748
        %v958 = vpop.f32.mrf.mxu0
        %v959 = vadd.f32 %v815, %v958
        %960 = vmatmul.f32.gmra.mxu0 %v749
        %v961 = vpop.f32.mrf.mxu0
        %v962 = vadd.f32 %v820, %v961
        %963 = vmatmul.f32.gmra.mxu0 %v750
        %v964 = vpop.f32.mrf.mxu0
        %v965 = vadd.f32 %v825, %v964
        %966 = vmatmul.f32.gmra.mxu0 %v751
        %v967 = vpop.f32.mrf.mxu0
        %v968 = vadd.f32 %v830, %v967
        %969 = vmatmul.f32.gmra.mxu0 %v752
        %v970 = vpop.f32.mrf.mxu0
        %v971 = vadd.f32 %v835, %v970
        %972 = vmatmul.f32.gmra.mxu0 %v753
        %v973 = vpop.f32.mrf.mxu0
        %v974 = vadd.f32 %v840, %v973
        %975 = vmatmul.f32.gmra.mxu0 %v754
        %v976 = vpop.f32.mrf.mxu0
        %v977 = vadd.f32 %v845, %v976
        %978 = vmatmul.f32.gmra.mxu0 %v755
        %v979 = vpop.f32.mrf.mxu0
        %v980 = vadd.f32 %v850, %v979
        %981 = vdwg.mxu0
        %982 = vmatpush.msra.mxu0 %v738
        %983 = vmatpush.msra.mxu0 %v734
        %984 = vmatpush.msra.mxu0 %v730
        %985 = vmatpush.msra.mxu0 %v726
        %986 = vmatpush.msra.mxu0 %v722
        %987 = vmatpush.msra.mxu0 %v718
        %988 = vmatpush.msra.mxu0 %v714
        %989 = vmatpush.msra.mxu0 %v710
        %990 = vmatpush.msra.mxu0 %v706
        %991 = vmatpush.msra.mxu0 %v702
        %992 = vmatpush.msra.mxu0 %v698
        %993 = vmatpush.msra.mxu0 %v694
        %994 = vmatpush.msra.mxu0 %v690
        %995 = vmatpush.msra.mxu0 %v686
        %996 = vmatpush.msra.mxu0 %v682
        %997 = vmatpush.msra.mxu0 %v678
        %998 = vmatmul.f32.gmra.mxu0 %v740
        %v999 = vpop.f32.mrf.mxu0
        %v1000 = vadd.f32 %v775, %v999
        %1001 = vmatmul.f32.gmra.mxu0 %v741
        %v1002 = vpop.f32.mrf.mxu0
        %v1003 = vadd.f32 %v780, %v1002
        %1004 = vmatmul.f32.gmra.mxu0 %v742
        %v1005 = vpop.f32.mrf.mxu0
        %v1006 = vadd.f32 %v785, %v1005
        %1007 = vmatmul.f32.gmra.mxu0 %v743
        %v1008 = vpop.f32.mrf.mxu0
        %v1009 = vadd.f32 %v790, %v1008
        %1010 = vmatmul.f32.gmra.mxu0 %v744
        %v1011 = vpop.f32.mrf.mxu0
        %v1012 = vadd.f32 %v795, %v1011
        %1013 = vmatmul.f32.gmra.mxu0 %v745
        %v1014 = vpop.f32.mrf.mxu0
        %v1015 = vadd.f32 %v800, %v1014
        %1016 = vmatmul.f32.gmra.mxu0 %v746
        %v1017 = vpop.f32.mrf.mxu0
        %v1018 = vadd.f32 %v805, %v1017
        %1019 = vmatmul.f32.gmra.mxu0 %v747
        %v1020 = vpop.f32.mrf.mxu0
        %v1021 = vadd.f32 %v810, %v1020
        %1022 = vmatmul.f32.gmra.mxu0 %v748
        %v1023 = vpop.f32.mrf.mxu0
        %v1024 = vadd.f32 %v815, %v1023
        %1025 = vmatmul.f32.gmra.mxu0 %v749
        %v1026 = vpop.f32.mrf.mxu0
        %v1027 = vadd.f32 %v820, %v1026
        %1028 = vmatmul.f32.gmra.mxu0 %v750
        %v1029 = vpop.f32.mrf.mxu0
        %v1030 = vadd.f32 %v825, %v1029
        %1031 = vmatmul.f32.gmra.mxu0 %v751
        %v1032 = vpop.f32.mrf.mxu0
        %v1033 = vadd.f32 %v830, %v1032
        %1034 = vmatmul.f32.gmra.mxu0 %v752
        %v1035 = vpop.f32.mrf.mxu0
        %v1036 = vadd.f32 %v835, %v1035
        %1037 = vmatmul.f32.gmra.mxu0 %v753
        %v1038 = vpop.f32.mrf.mxu0
        %v1039 = vadd.f32 %v840, %v1038
        %1040 = vmatmul.f32.gmra.mxu0 %v754
        %v1041 = vpop.f32.mrf.mxu0
        %v1042 = vadd.f32 %v845, %v1041
        %1043 = vmatmul.f32.gmra.mxu0 %v755
        %v1044 = vpop.f32.mrf.mxu0
        %v1045 = vadd.f32 %v850, %v1044
        %1046 = vdwg.mxu0
        %1047 = vmatpush.msra.mxu0 %v739
        %1048 = vmatpush.msra.mxu0 %v735
        %1049 = vmatpush.msra.mxu0 %v731
        %1050 = vmatpush.msra.mxu0 %v727
        %1051 = vmatpush.msra.mxu0 %v723
        %1052 = vmatpush.msra.mxu0 %v719
        %1053 = vmatpush.msra.mxu0 %v715
        %1054 = vmatpush.msra.mxu0 %v711
        %1055 = vmatpush.msra.mxu0 %v707
        %1056 = vmatpush.msra.mxu0 %v703
        %1057 = vmatpush.msra.mxu0 %v699
        %1058 = vmatpush.msra.mxu0 %v695
        %1059 = vmatpush.msra.mxu0 %v691
        %1060 = vmatpush.msra.mxu0 %v687
        %1061 = vmatpush.msra.mxu0 %v683
        %1062 = vmatpush.msra.mxu0 %v679
        %1063 = vmatmul.f32.gmra.mxu0 %v740
        %v1064 = vpop.f32.mrf.mxu0
        %v1065 = vadd.f32 %v775, %v1064
        %1066 = vmatmul.f32.gmra.mxu0 %v741
        %v1067 = vpop.f32.mrf.mxu0
        %v1068 = vadd.f32 %v780, %v1067
        %1069 = vmatmul.f32.gmra.mxu0 %v742
        %v1070 = vpop.f32.mrf.mxu0
        %v1071 = vadd.f32 %v785, %v1070
        %1072 = vmatmul.f32.gmra.mxu0 %v743
        %v1073 = vpop.f32.mrf.mxu0
        %v1074 = vadd.f32 %v790, %v1073
        %1075 = vmatmul.f32.gmra.mxu0 %v744
        %v1076 = vpop.f32.mrf.mxu0
        %v1077 = vadd.f32 %v795, %v1076
        %1078 = vmatmul.f32.gmra.mxu0 %v745
        %v1079 = vpop.f32.mrf.mxu0
        %v1080 = vadd.f32 %v800, %v1079
        %1081 = vmatmul.f32.gmra.mxu0 %v746
        %v1082 = vpop.f32.mrf.mxu0
        %v1083 = vadd.f32 %v805, %v1082
        %1084 = vmatmul.f32.gmra.mxu0 %v747
        %v1085 = vpop.f32.mrf.mxu0
        %v1086 = vadd.f32 %v810, %v1085
        %1087 = vmatmul.f32.gmra.mxu0 %v748
        %v1088 = vpop.f32.mrf.mxu0
        %v1089 = vadd.f32 %v815, %v1088
        %1090 = vmatmul.f32.gmra.mxu0 %v749
        %v1091 = vpop.f32.mrf.mxu0
        %v1092 = vadd.f32 %v820, %v1091
        %1093 = vmatmul.f32.gmra.mxu0 %v750
        %v1094 = vpop.f32.mrf.mxu0
        %v1095 = vadd.f32 %v825, %v1094
        %1096 = vmatmul.f32.gmra.mxu0 %v751
        %v1097 = vpop.f32.mrf.mxu0
        %v1098 = vadd.f32 %v830, %v1097
        %1099 = vmatmul.f32.gmra.mxu0 %v752
        %v1100 = vpop.f32.mrf.mxu0
        %v1101 = vadd.f32 %v835, %v1100
        %1102 = vmatmul.f32.gmra.mxu0 %v753
        %v1103 = vpop.f32.mrf.mxu0
        %v1104 = vadd.f32 %v840, %v1103
        %1105 = vmatmul.f32.gmra.mxu0 %v754
        %v1106 = vpop.f32.mrf.mxu0
        %v1107 = vadd.f32 %v845, %v1106
        %1108 = vmatmul.f32.gmra.mxu0 %v755
        %v1109 = vpop.f32.mrf.mxu0
        %v1110 = vadd.f32 %v850, %v1109
        %1111 = vdwg.mxu0
        %v1112 = vtanh.pop %v870
        %v1113 = vtanh.pop %v935
        %v1114 = vtanh.pop %v1000
        %v1115 = vtanh.pop %v1065
        %v1116 = vtanh.pop %v873
        %v1117 = vtanh.pop %v938
        %v1118 = vtanh.pop %v1003
        %v1119 = vtanh.pop %v1068
        %v1120 = vtanh.pop %v876
        %v1121 = vtanh.pop %v941
        %v1122 = vtanh.pop %v1006
        %v1123 = vtanh.pop %v1071
        %v1124 = vtanh.pop %v879
        %v1125 = vtanh.pop %v944
        %v1126 = vtanh.pop %v1009
        %v1127 = vtanh.pop %v1074
        %v1128 = vtanh.pop %v882
        %v1129 = vtanh.pop %v947
        %v1130 = vtanh.pop %v1012
        %v1131 = vtanh.pop %v1077
        %v1132 = vtanh.pop %v885
        %v1133 = vtanh.pop %v950
        %v1134 = vtanh.pop %v1015
        %v1135 = vtanh.pop %v1080
        %v1136 = vtanh.pop %v888
        %v1137 = vtanh.pop %v953
        %v1138 = vtanh.pop %v1018
        %v1139 = vtanh.pop %v1083
        %v1140 = vtanh.pop %v891
        %v1141 = vtanh.pop %v956
        %v1142 = vtanh.pop %v1021
        %v1143 = vtanh.pop %v1086
        %v1144 = vtanh.pop %v894
        %v1145 = vtanh.pop %v959
        %v1146 = vtanh.pop %v1024
        %v1147 = vtanh.pop %v1089
        %v1148 = vtanh.pop %v897
        %v1149 = vtanh.pop %v962
        %v1150 = vtanh.pop %v1027
        %v1151 = vtanh.pop %v1092
        %v1152 = vtanh.pop %v900
        %v1153 = vtanh.pop %v965
        %v1154 = vtanh.pop %v1030
        %v1155 = vtanh.pop %v1095
        %v1156 = vtanh.pop %v903
        %v1157 = vtanh.pop %v968
        %v1158 = vtanh.pop %v1033
        %v1159 = vtanh.pop %v1098
        %v1160 = vtanh.pop %v906
        %v1161 = vtanh.pop %v971
        %v1162 = vtanh.pop %v1036
        %v1163 = vtanh.pop %v1101
        %v1164 = vtanh.pop %v909
        %v1165 = vtanh.pop %v974
        %v1166 = vtanh.pop %v1039
        %v1167 = vtanh.pop %v1104
        %v1168 = vtanh.pop %v912
        %v1169 = vtanh.pop %v977
        %v1170 = vtanh.pop %v1042
        %v1171 = vtanh.pop %v1107
        %v1172 = vtanh.pop %v915
        %v1173 = vtanh.pop %v980
        %v1174 = vtanh.pop %v1045
        %v1175 = vtanh.pop %v1110
        %v1176 = vld [vmem:[%s5] sm:$0xff]
        %v1177 = vld [vmem:[%s6] sm:$0xff]
        %1179 = vset.pattern.permute.xlu0 0
        %1180 = vperm.xlu0 %1179, %v1177
        %v1181 = vpop.permute.xlu0 %1180
        %1183 = vmatpush.msra.mxu0 %v1172
        %1184 = vmatpush.msra.mxu0 %v1168
        %1185 = vmatpush.msra.mxu0 %v1164
        %1186 = vmatpush.msra.mxu0 %v1160
        %1187 = vmatpush.msra.mxu0 %v1156
        %1188 = vmatpush.msra.mxu0 %v1152
        %1189 = vmatpush.msra.mxu0 %v1148
        %1190 = vmatpush.msra.mxu0 %v1144
        %1191 = vmatpush.msra.mxu0 %v1140
        %1192 = vmatpush.msra.mxu0 %v1136
        %1193 = vmatpush.msra.mxu0 %v1132
        %1194 = vmatpush.msra.mxu0 %v1128
        %1195 = vmatpush.msra.mxu0 %v1124
        %1196 = vmatpush.msra.mxu0 %v1120
        %1197 = vmatpush.msra.mxu0 %v1116
        %1198 = vmatpush.msra.mxu0 %v1112
        %1199 = vmatmul.f32.gmra.mxu0 %v1176
        %v1200 = vpop.f32.mrf.mxu0
        %v1201 = vadd.f32 %v1181, %v1200
        %1202 = vdwg.mxu0
        %1203 = vmatpush.msra.mxu0 %v1173
        %1204 = vmatpush.msra.mxu0 %v1169
        %1205 = vmatpush.msra.mxu0 %v1165
        %1206 = vmatpush.msra.mxu0 %v1161
        %1207 = vmatpush.msra.mxu0 %v1157
        %1208 = vmatpush.msra.mxu0 %v1153
        %1209 = vmatpush.msra.mxu0 %v1149
        %1210 = vmatpush.msra.mxu0 %v1145
        %1211 = vmatpush.msra.mxu0 %v1141
        %1212 = vmatpush.msra.mxu0 %v1137
        %1213 = vmatpush.msra.mxu0 %v1133
        %1214 = vmatpush.msra.mxu0 %v1129
        %1215 = vmatpush.msra.mxu0 %v1125
        %1216 = vmatpush.msra.mxu0 %v1121
        %1217 = vmatpush.msra.mxu0 %v1117
        %1218 = vmatpush.msra.mxu0 %v1113
        %1219 = vmatmul.f32.gmra.mxu0 %v1176
        %v1220 = vpop.f32.mrf.mxu0
        %v1221 = vadd.f32 %v1181, %v1220
        %1222 = vdwg.mxu0
        %1223 = vmatpush.msra.mxu0 %v1174
        %1224 = vmatpush.msra.mxu0 %v1170
        %1225 = vmatpush.msra.mxu0 %v1166
        %1226 = vmatpush.msra.mxu0 %v1162
        %1227 = vmatpush.msra.mxu0 %v1158
        %1228 = vmatpush.msra.mxu0 %v1154
        %1229 = vmatpush.msra.mxu0 %v1150
        %1230 = vmatpush.msra.mxu0 %v1146
        %1231 = vmatpush.msra.mxu0 %v1142
        %1232 = vmatpush.msra.mxu0 %v1138
        %1233 = vmatpush.msra.mxu0 %v1134
        %1234 = vmatpush.msra.mxu0 %v1130
        %1235 = vmatpush.msra.mxu0 %v1126
        %1236 = vmatpush.msra.mxu0 %v1122
        %1237 = vmatpush.msra.mxu0 %v1118
        %1238 = vmatpush.msra.mxu0 %v1114
        %1239 = vmatmul.f32.gmra.mxu0 %v1176
        %v1240 = vpop.f32.mrf.mxu0
        %v1241 = vadd.f32 %v1181, %v1240
        %1242 = vdwg.mxu0
        %1243 = vmatpush.msra.mxu0 %v1175
        %1244 = vmatpush.msra.mxu0 %v1171
        %1245 = vmatpush.msra.mxu0 %v1167
        %1246 = vmatpush.msra.mxu0 %v1163
        %1247 = vmatpush.msra.mxu0 %v1159
        %1248 = vmatpush.msra.mxu0 %v1155
        %1249 = vmatpush.msra.mxu0 %v1151
        %1250 = vmatpush.msra.mxu0 %v1147
        %1251 = vmatpush.msra.mxu0 %v1143
        %1252 = vmatpush.msra.mxu0 %v1139
        %1253 = vmatpush.msra.mxu0 %v1135
        %1254 = vmatpush.msra.mxu0 %v1131
        %1255 = vmatpush.msra.mxu0 %v1127
        %1256 = vmatpush.msra.mxu0 %v1123
        %1257 = vmatpush.msra.mxu0 %v1119
        %1258 = vmatpush.msra.mxu0 %v1115
        %1259 = vmatmul.f32.gmra.mxu0 %v1176
        %v1260 = vpop.f32.mrf.mxu0
        %v1261 = vadd.f32 %v1181, %v1260
        %1262 = vdwg.mxu0
        %1263 = vst [vmem:[%s344] sm:$0xff] %v1201
        %1264 = vst [vmem:[%s344 + $0x8] sm:$0xff] %v1221
        %1265 = vst [vmem:[%s344 + $0x10] sm:$0xff] %v1241
        %1266 = vst [vmem:[%s344 + $0x18] sm:$0xff] %v1261
        %s1267 = smul.u32 4, %s21
        %p1268 = scmp.lt.s32.totalorder %s1267, 7
        %s1269 = scalar_select %p1268, %s1267, 7
        %s1270 = smul.addr %s1269, 8
        %s1271 = scalar_lea.vmem %s7, %s1270
        // Predicated region
        $region65: #{forward.1} parent=47 // pred_check
          %p1272 = pneg %p191
        $region66: #{forward.1} parent=47 // pred_check_branch
          %1274 = sbr.rel (%p1272) target = $region68
        $region67: #{forward.1} parent=47 // pred_region
          %s1275 = smul.u32 4, %s21
        $region68: #{forward.1} parent=47 // pred_fallthru
          _
      $region48: #{forward.1} parent=5 // pred_fallthru
        _
      %p1276 = scmp.le.s32.totalorder 2, %s16
      // Predicated region
      $region69: #{forward.1} parent=5 // pred_check
        %p1277 = pneg %p1276
      $region70: #{forward.1} parent=5 // pred_check_branch
        %1279 = sbr.rel (%p1277) target = $region72
      $region71: #{forward.1} parent=5 // pred_region
        %s1280 = ssub.s32 %s16, 2
        // Predicated region
        $region73: #{forward.1} parent=71 // pred_check
          %p1281 = pneg %p197
        $region74: #{forward.1} parent=71 // pred_check_branch
          %1283 = sbr.rel (%p1281) target = $region76
        $region75: #{forward.1} parent=71 // pred_region
          %s1284 = smul.u32 4, %s22
          %p1285 = scmp.lt.s32.totalorder %s1284, 7
          %s1286 = scalar_select %p1285, %s1284, 7
          %s1287 = smul.addr %s1286, 8
          %s1288 = scalar_lea.vmem %s7, %s1287
        $region76: #{forward.1} parent=71 // pred_fallthru
          _
      $region72: #{forward.1} parent=5 // pred_fallthru
        _
    $region6: #{forward.1} parent=1 // loop_footer
      %s20 = sadd.s32 1, %s16
    $region7: #{forward.1} parent=1 // loop_footer_branch
      %15 = sbr.rel target = $region3
    $region8: #{forward.1} parent=1 // loop_exit
      _
    %1289 = vsyncpa [#allocation3], 1
    %s1290 = scalar_lea.sflag [#allocation3], 1
    %1291 = vsyncpa %s1290, 1
    %1292 = vsyncpa [#allocation5], 1
    %1293 = vsyncpa [#allocation8], 1

</llo_original>
